<compile_context>
chip_gen: v7x
topology: tpu7x:2x2x1
jax: 0.10.0
libtpu: 0.0.40
codegen_flags: <defaults>
</compile_context>

<pallas_src>
import functools

import jax
import jax.numpy as jnp
from jax.experimental import pallas as pl
from jax.experimental.pallas import tpu as pltpu


def _embedding_kernel(x_ref, o_ref, *, freq_bands, use_recurrence):
    # x_ref: [rt, 128] lane-dense tile.  o_ref: [P, rt, 128].
    x = x_ref[...].astype(jnp.float32)
    o_ref[0, :, :] = x.astype(o_ref.dtype)

    if not freq_bands:
        return

    if use_recurrence:
        # freq_bands == [1, 2, 4, ...]: sin/cos once, then double-angle (VPU only).
        s = jnp.sin(x)
        c = jnp.cos(x)
        o_ref[1, :, :] = s.astype(o_ref.dtype)
        o_ref[2, :, :] = c.astype(o_ref.dtype)
        for k in range(1, len(freq_bands)):
            s, c = 2.0 * s * c, c * c - s * s
            o_ref[2 * k + 1, :, :] = s.astype(o_ref.dtype)
            o_ref[2 * k + 2, :, :] = c.astype(o_ref.dtype)
    else:
        for k, f in enumerate(freq_bands):  # static floats -> unrolled
            fx = f * x
            o_ref[2 * k + 1, :, :] = jnp.sin(fx).astype(o_ref.dtype)
            o_ref[2 * k + 2, :, :] = jnp.cos(fx).astype(o_ref.dtype)


def embedding_forward(x, n_freqs, logscale=True, row_tile=512, out_dtype=None):
    """x: [N, C] float array. Returns [N, C * (1 + 2*n_freqs)] matching PyTorch ordering."""
    N, C = x.shape
    P = 1 + 2 * n_freqs
    out_dtype = x.dtype if out_dtype is None else out_dtype

    if logscale:
        freq_bands = [float(2.0 ** k) for k in range(n_freqs)]
    else:
        if n_freqs <= 1:
            freq_bands = [1.0] * n_freqs
        else:
            hi = 2.0 ** (n_freqs - 1)
            freq_bands = [
                float(1.0 + (hi - 1.0) * k / (n_freqs - 1)) for k in range(n_freqs)
            ]

    total = N * C
    flat = x.reshape(total)                       # free (contiguous) reshape
    pad = (-total) % 128
    if pad:
        # Only materialized when N*C is not already lane-aligned.
        flat = jnp.pad(flat, (0, pad))
    M = flat.shape[0] // 128
    xv = flat.reshape(M, 128)                     # lane-dense view

    # Tile of the [M, 128] view; partial last tile handled by Pallas via cdiv grid.
    rt = min(row_tile, M)
    if rt < M:
        rt = max(8, (rt // 8) * 8)
    grid = pl.cdiv(M, rt)

    kernel = functools.partial(
        _embedding_kernel, freq_bands=freq_bands, use_recurrence=logscale
    )

    out = pl.pallas_call(
        kernel,
        out_shape=jax.ShapeDtypeStruct((P, M, 128), out_dtype),
        grid_spec=pltpu.PrefetchScalarGridSpec(
            num_scalar_prefetch=0,
            grid=(grid,),
            in_specs=[pl.BlockSpec((rt, 128), lambda i: (i, 0))],
            out_specs=pl.BlockSpec((P, rt, 128), lambda i: (0, i, 0)),
        ),
        compiler_params=pltpu.CompilerParams(
            dimension_semantics=("parallel",),
        ),
    )(xv)

    # Re-interleave to the PyTorch per-row ordering: out[n, p*C + c] = part_p[n, c].
    # TODO(synk): this transpose could be folded into the first MLP weight matrix downstream.
    out = out.reshape(P, M * 128)
    if pad:
        out = out[:, :total]
    out = out.reshape(P, N, C)
    out = jnp.transpose(out, (1, 0, 2)).reshape(N, P * C)
    return out


def embedding_ref(x, n_freqs, logscale=True):
    """Pure-JAX reference mirroring the PyTorch forward exactly."""
    if logscale:
        freq_bands = 2.0 ** jnp.linspace(0.0, n_freqs - 1, n_freqs)
    else:
        freq_bands = jnp.linspace(1.0, 2.0 ** (n_freqs - 1), n_freqs)
    out = [x]
    for f in freq_bands:
        out.append(jnp.sin(f * x))
        out.append(jnp.cos(f * x))
    return jnp.concatenate(out, axis=-1)


def _check(x, n_freqs, logscale, atol, **kw):
    out = jax.block_until_ready(embedding_forward(x, n_freqs, logscale=logscale, **kw))
    ref = embedding_ref(x, n_freqs, logscale=logscale)
    assert out.shape == ref.shape, (out.shape, ref.shape)
    err = float(jnp.max(jnp.abs(out - ref)))
    assert err <= atol, err
    return out


if __name__ == "__main__":
    key = jax.random.PRNGKey(0)
    k1, k2, k3, k4 = jax.random.split(key, 4)

    # 1) Main case: logscale, K=4, lane-aligned input (N*C % 128 == 0).
    x1 = jax.random.normal(k1, (256, 4), dtype=jnp.float32)
    _check(x1, 4, logscale=True, atol=1e-4)

    # 2) Linear (non-logscale) freq bands, direct sin/cos path.
    x2 = jax.random.normal(k2, (512, 4), dtype=jnp.float32)
    _check(x2, 4, logscale=False, atol=1e-5)

    # 3) Multi-tile grid with a partial last tile (small row_tile to force grid > 1).
    x3 = jax.random.normal(k3, (320, 4), dtype=jnp.float32)
    _check(x3, 4, logscale=True, atol=1e-4, row_tile=8)

    # 4) N*C not a multiple of 128 (exercises the pad/slice path), C=3 like NeRF xyz.
    x4 = jax.random.normal(k4, (341, 3), dtype=jnp.float32)
    _check(x4, 4, logscale=True, atol=1e-4)

    print("KERNEL_OK")
</pallas_src>

<mosaic_0001>
module attributes {stable_mosaic.version = 11 : i64} {
  func.func @_embedding_kernel(%arg0: i32, %arg1: memref<8x128xf32, #tpu.memory_space<vmem>>, %arg2: memref<9x8x128xf32, #tpu.memory_space<vmem>>) attributes {dimension_semantics = [#tpu.dimension_semantics<parallel>], iteration_bounds = array<i64: 1>, scalar_prefetch = 0 : i64, scratch_operands = 0 : i64, tpu.core_type = #tpu.core_type<tc>, window_params = [{transform_indices = @transform_0, window_bounds = array<i64: 8, 128>}, {transform_indices = @transform_1, window_bounds = array<i64: 9, 8, 128>}]} {
    %c0 = arith.constant 0 : index
    %c0_0 = arith.constant 0 : index
    %0 = vector.load %arg1[%c0, %c0_0] : memref<8x128xf32, #tpu.memory_space<vmem>>, vector<8x128xf32>
    %c0_1 = arith.constant 0 : index
    %c0_2 = arith.constant 0 : index
    %c0_3 = arith.constant 0 : index
    %1 = vector.load %arg2[%c0_1, %c0_2, %c0_3] : memref<9x8x128xf32, #tpu.memory_space<vmem>>, vector<1x8x128xf32>
    %2 = vector.shape_cast %1 : vector<1x8x128xf32> to vector<8x128xf32>
    %3 = vector.shape_cast %0 : vector<8x128xf32> to vector<1x8x128xf32>
    tpu.vector_store %arg2[%c0_1, %c0_2, %c0_3], %3 {strides = array<i32>} : memref<9x8x128xf32, #tpu.memory_space<vmem>>, vector<1x8x128xf32>,
    %4 = math.sin %0 : vector<8x128xf32>
    %5 = math.cos %0 : vector<8x128xf32>
    %c1 = arith.constant 1 : index
    %c0_4 = arith.constant 0 : index
    %c0_5 = arith.constant 0 : index
    %6 = vector.load %arg2[%c1, %c0_4, %c0_5] : memref<9x8x128xf32, #tpu.memory_space<vmem>>, vector<1x8x128xf32>
    %7 = vector.shape_cast %6 : vector<1x8x128xf32> to vector<8x128xf32>
    %8 = vector.shape_cast %4 : vector<8x128xf32> to vector<1x8x128xf32>
    tpu.vector_store %arg2[%c1, %c0_4, %c0_5], %8 {strides = array<i32>} : memref<9x8x128xf32, #tpu.memory_space<vmem>>, vector<1x8x128xf32>,
    %c2 = arith.constant 2 : index
    %c0_6 = arith.constant 0 : index
    %c0_7 = arith.constant 0 : index
    %9 = vector.load %arg2[%c2, %c0_6, %c0_7] : memref<9x8x128xf32, #tpu.memory_space<vmem>>, vector<1x8x128xf32>
    %10 = vector.shape_cast %9 : vector<1x8x128xf32> to vector<8x128xf32>
    %11 = vector.shape_cast %5 : vector<8x128xf32> to vector<1x8x128xf32>
    tpu.vector_store %arg2[%c2, %c0_6, %c0_7], %11 {strides = array<i32>} : memref<9x8x128xf32, #tpu.memory_space<vmem>>, vector<1x8x128xf32>,
    %cst = arith.constant 2.000000e+00 : f32
    %12 = vector.broadcast %cst : f32 to vector<8x128xf32>
    %13 = arith.mulf %12, %4 : vector<8x128xf32>
    %14 = arith.mulf %13, %5 : vector<8x128xf32>
    %15 = arith.mulf %5, %5 : vector<8x128xf32>
    %16 = arith.mulf %4, %4 : vector<8x128xf32>
    %17 = arith.subf %15, %16 : vector<8x128xf32>
    %c3 = arith.constant 3 : index
    %c0_8 = arith.constant 0 : index
    %c0_9 = arith.constant 0 : index
    %18 = vector.load %arg2[%c3, %c0_8, %c0_9] : memref<9x8x128xf32, #tpu.memory_space<vmem>>, vector<1x8x128xf32>
    %19 = vector.shape_cast %18 : vector<1x8x128xf32> to vector<8x128xf32>
    %20 = vector.shape_cast %14 : vector<8x128xf32> to vector<1x8x128xf32>
    tpu.vector_store %arg2[%c3, %c0_8, %c0_9], %20 {strides = array<i32>} : memref<9x8x128xf32, #tpu.memory_space<vmem>>, vector<1x8x128xf32>,
    %c4 = arith.constant 4 : index
    %c0_10 = arith.constant 0 : index
    %c0_11 = arith.constant 0 : index
    %21 = vector.load %arg2[%c4, %c0_10, %c0_11] : memref<9x8x128xf32, #tpu.memory_space<vmem>>, vector<1x8x128xf32>
    %22 = vector.shape_cast %21 : vector<1x8x128xf32> to vector<8x128xf32>
    %23 = vector.shape_cast %17 : vector<8x128xf32> to vector<1x8x128xf32>
    tpu.vector_store %arg2[%c4, %c0_10, %c0_11], %23 {strides = array<i32>} : memref<9x8x128xf32, #tpu.memory_space<vmem>>, vector<1x8x128xf32>,
    %cst_12 = arith.constant 2.000000e+00 : f32
    %24 = vector.broadcast %cst_12 : f32 to vector<8x128xf32>
    %25 = arith.mulf %24, %14 : vector<8x128xf32>
    %26 = arith.mulf %25, %17 : vector<8x128xf32>
    %27 = arith.mulf %17, %17 : vector<8x128xf32>
    %28 = arith.mulf %14, %14 : vector<8x128xf32>
    %29 = arith.subf %27, %28 : vector<8x128xf32>
    %c5 = arith.constant 5 : index
    %c0_13 = arith.constant 0 : index
    %c0_14 = arith.constant 0 : index
    %30 = vector.load %arg2[%c5, %c0_13, %c0_14] : memref<9x8x128xf32, #tpu.memory_space<vmem>>, vector<1x8x128xf32>
    %31 = vector.shape_cast %30 : vector<1x8x128xf32> to vector<8x128xf32>
    %32 = vector.shape_cast %26 : vector<8x128xf32> to vector<1x8x128xf32>
    tpu.vector_store %arg2[%c5, %c0_13, %c0_14], %32 {strides = array<i32>} : memref<9x8x128xf32, #tpu.memory_space<vmem>>, vector<1x8x128xf32>,
    %c6 = arith.constant 6 : index
    %c0_15 = arith.constant 0 : index
    %c0_16 = arith.constant 0 : index
    %33 = vector.load %arg2[%c6, %c0_15, %c0_16] : memref<9x8x128xf32, #tpu.memory_space<vmem>>, vector<1x8x128xf32>
    %34 = vector.shape_cast %33 : vector<1x8x128xf32> to vector<8x128xf32>
    %35 = vector.shape_cast %29 : vector<8x128xf32> to vector<1x8x128xf32>
    tpu.vector_store %arg2[%c6, %c0_15, %c0_16], %35 {strides = array<i32>} : memref<9x8x128xf32, #tpu.memory_space<vmem>>, vector<1x8x128xf32>,
    %cst_17 = arith.constant 2.000000e+00 : f32
    %36 = vector.broadcast %cst_17 : f32 to vector<8x128xf32>
    %37 = arith.mulf %36, %26 : vector<8x128xf32>
    %38 = arith.mulf %37, %29 : vector<8x128xf32>
    %39 = arith.mulf %29, %29 : vector<8x128xf32>
    %40 = arith.mulf %26, %26 : vector<8x128xf32>
    %41 = arith.subf %39, %40 : vector<8x128xf32>
    %c7 = arith.constant 7 : index
    %c0_18 = arith.constant 0 : index
    %c0_19 = arith.constant 0 : index
    %42 = vector.load %arg2[%c7, %c0_18, %c0_19] : memref<9x8x128xf32, #tpu.memory_space<vmem>>, vector<1x8x128xf32>
    %43 = vector.shape_cast %42 : vector<1x8x128xf32> to vector<8x128xf32>
    %44 = vector.shape_cast %38 : vector<8x128xf32> to vector<1x8x128xf32>
    tpu.vector_store %arg2[%c7, %c0_18, %c0_19], %44 {strides = array<i32>} : memref<9x8x128xf32, #tpu.memory_space<vmem>>, vector<1x8x128xf32>,
    %c8 = arith.constant 8 : index
    %c0_20 = arith.constant 0 : index
    %c0_21 = arith.constant 0 : index
    %45 = vector.load %arg2[%c8, %c0_20, %c0_21] : memref<9x8x128xf32, #tpu.memory_space<vmem>>, vector<1x8x128xf32>
    %46 = vector.shape_cast %45 : vector<1x8x128xf32> to vector<8x128xf32>
    %47 = vector.shape_cast %41 : vector<8x128xf32> to vector<1x8x128xf32>
    tpu.vector_store %arg2[%c8, %c0_20, %c0_21], %47 {strides = array<i32>} : memref<9x8x128xf32, #tpu.memory_space<vmem>>, vector<1x8x128xf32>,
    return
  }
  func.func @transform_0(%arg0: i32) -> (i32, i32) {
    %c0_i32 = arith.constant 0 : i32
    %c0_i32_0 = arith.constant 0 : i32
    return %arg0, %c0_i32 : i32, i32
  }
  func.func @transform_1(%arg0: i32) -> (i32, i32, i32) {
    %c0_i32 = arith.constant 0 : i32
    %c0_i32_0 = arith.constant 0 : i32
    %c0_i32_1 = arith.constant 0 : i32
    return %c0_i32, %arg0, %c0_i32_0 : i32, i32, i32
  }
}

</mosaic_0001>

<llo_original>
// kernel: tpu_custom_call.1
$region0: #{tpu_custom_call.1}
  #allocation0 [shape = 'u32[]', space=smem, size = 0x4, offset = 0x4, fixed_abs, tag = 'smem constant byte address 0x4 - core index']
  #allocation1 [shape = 'u32[144,128]{1,0:T(1,128)}', space=vmem, size = 0x12000, scoped, tag = 'internal scratch']
  %s0 = inlined_call_operand.hbm [shape: f32[8,128], index: 0, kind: input, shape index: {}]
  %s1 = inlined_call_operand.hbm [shape: f32[9,8,128], index: 1, kind: output, shape index: {}]
  %s2 = sld [smem:[#allocation0]]
  $region18: #{tpu_custom_call.1} parent=0
    _
  %s4 = ssub.s32 1, %s2
  %s5 = scalar_select 0, %s4, %s2
  $region1: #{tpu_custom_call.1} parent=0
    #allocation2 [shape = 'u8[4096]{0}', space=vmem, size = 0x1000, scoped, tag = 'input window, operand 0, single buffered']
    #allocation3 [shape = 's32[1]{0}', space=sflag, size = 0x4, scoped, tag = 'scoped memory for tpu_custom_call.1']
    #allocation4 [shape = 's32[1]{0}', space=sflag, size = 0x4, scoped, tag = 'scoped memory for tpu_custom_call.1']
    #allocation5 [shape = 'u8[36864]{0}', space=vmem, size = 0x9000, scoped, tag = 'output window, operand 0, single buffered']
    %6 = vsyncpa [#allocation3], 0
    %7 = vsyncpa [#allocation4], 0
    // Predicated region
    $region2: #{tpu_custom_call.1} parent=1 // pred_check
      _
    $region3: #{tpu_custom_call.1} parent=1 // pred_check_branch
      %9 = sbr.rel (0) target = $region5
    $region4: #{tpu_custom_call.1} parent=1 // pred_region
      %s11 = ssub.s32 128, 128
      %12 = vsyncadd [#allocation3], %s11
      %s14 = sshll.u32 [#allocation2], 4
      %s15 = int_to_ptr.vmem [resolvable:$true] %s14
      %17 = dma.hbm_to_vmem [thread:$0]  %s0, 128, %s15, [#allocation3]
    $region5: #{tpu_custom_call.1} parent=1 // pred_fallthru
      _
    // Predicated region
    $region6: #{tpu_custom_call.1} parent=1 // pred_check
      _
    $region7: #{tpu_custom_call.1} parent=1 // pred_check_branch
      %19 = sbr.rel (0) target = $region9
    $region8: #{tpu_custom_call.1} parent=1 // pred_region
      %20 = dma.done [#allocation3], 128
    $region9: #{tpu_custom_call.1} parent=1 // pred_fallthru
      _
    %v21 = vld [vmem:[#allocation2] sm:$0xff]
    %22 = vst [vmem:[#allocation5] sm:$0xff] %v21
    %v23 = vand.u32 2147483647, %v21
    %vm24 = vcmp.le.f32.partialorder %v23, 0.7853982
    %vm25 = vcmp.lt.s32.totalorder %v21, 0
    %v26 = vand.u32 %v21, 2139095040
    %v27 = vshrl.u32 %v26, 23
    %v28 = vsub.s32 %v27, 127
    %v29 = vand.u32 2147483647, %v21
    %v30 = vand.u32 %v29, 8388607
    %v31 = vor.u32 %v30, 8388608
    %v32 = vsub.s32 0, %v31
    %v33 = vadd.s32 %v28, 1
    %vm34 = vcmp.gt.s32.totalorder %v33, 0
    %v35 = vsel %vm34, %v33, 0
    %v36 = vshrl.u32 %v35, 5
    %v37 = vand.u32 %v35, 31
    %v38 = vsub.s32 32, %v37
    %v39 = vshrl.u32 683565275, %v38
    %v40 = vshll.u32 683565275, %v37
    %v41 = vshrl.u32 2475754826, %v38
    %v42 = vor.u32 %v40, %v41
    %v43 = vshll.u32 2475754826, %v37
    %v44 = vshrl.u32 2131351028, %v38
    %v45 = vor.u32 %v43, %v44
    %v46 = vshll.u32 2131351028, %v37
    %v47 = vshrl.u32 2102212464, %v38
    %v48 = vor.u32 %v46, %v47
    %v49 = vshll.u32 2102212464, %v37
    %v50 = vshrl.u32 920167782, %v38
    %v51 = vor.u32 %v49, %v50
    %v52 = vshll.u32 920167782, %v37
    %v53 = vshrl.u32 1326507024, %v38
    %v54 = vor.u32 %v52, %v53
    %vm55 = vcmp.lt.s32.totalorder %v36, 1
    %vm56 = vcmp.lt.s32.totalorder %v36, 2
    %vm57 = vcmp.lt.s32.totalorder %v36, 3
    %vm58 = vcmp.lt.s32.totalorder %v36, 4
    %v59 = vsel %vm55, %v39, %v42
    %v60 = vsel %vm58, %v48, 2102212464
    %v61 = vsel %vm57, %v45, %v60
    %v62 = vsel %vm56, %v59, %v61
    %v63 = vsel %vm55, %v42, %v45
    %v64 = vsel %vm58, %v51, 920167782
    %v65 = vsel %vm57, %v48, %v64
    %v66 = vsel %vm56, %v63, %v65
    %v67 = vsel %vm55, %v45, %v48
    %v68 = vsel %vm58, %v54, 1326507024
    %v69 = vsel %vm57, %v51, %v68
    %v70 = vsel %vm56, %v67, %v69
    %v71 = vshll.u32 %v31, 8
    %v72 = vmul.u32.u64.compose %v71, %v70
    %v73 = vextract.low.u32 %v72
    %v74 = vextract.high.u32 %v72
    %v75 = vmul.u32.u64.compose %v71, %v66
    %v76 = vextract.low.u32 %v75
    %v77 = vextract.high.u32 %v75
    %v78 = vmul.u32 %v71, %v62
    %v79 = vadd.s32 %v74, %v76
    %vm80 = vc.u32 %v74, %v76
    %v81 = vadd.s32 %v77, 1
    %v82 = vsel %vm80, %v81, %v77
    %v83 = vadd.s32 %v78, %v82
    %v84 = vadd.s32 %v83, 536870912
    %v85 = vshrl.u32 %v84, 30
    %v86 = vshll.u32 %v85, 30
    %v87 = vsub.s32 %v83, %v86
    %vm88 = vcmp.lt.s32.totalorder %v87, 0
    %v89 = vsub.s32 0, %v87
    %v90 = vsel %vm88, %v89, %v87
    %v91 = vclz %v90
    %v92 = vsub.s32 %v91, 2
    %vm93 = vcmp.gt.s32.totalorder 0, %v92
    %v94 = vsel %vm93, 0, %v92
    %v95 = vsub.s32 32, %v94
    %v96 = vshll.u32 %v87, %v94
    %v97 = vshrl.u32 %v79, %v95
    %v98 = vor.u32 %v96, %v97
    %v99 = vsub.s32 4294967266, %v94
    %v100 = vadd.s32 %v99, 127
    %v101 = vshll.u32 %v100, 23
    %v102 = vor.u32 4788187, %v101
    %v103 = vand.u32 2147483647, %v102
    %v105 = vcvt.s32.f32 %v98
    %v106 = vmul.f32 %v105, %v103
    %v107 = vxor.u32 %v106, 2147483648
    %v108 = vsel %vm25, %v107, %v106
    %v109 = vsub.s32 4, %v85
    %v110 = vsel %vm25, %v109, %v85
    %v111 = vsel %vm24, %v21, %v108
    %v112 = vsel %vm24, 0, %v110
    %v113 = vcosq.f32.pop %v111
    %v114 = vsinq.f32.pop %v111
    %vm115 = vweird.f32 %v21
    %v116 = vadd.s32 %v112, 3
    %v117 = vand.u32 %v116, 3
    %vm118 = vcmp.lt.s32.totalorder %v117, 2
    %vm119 = vcmp.eq.s32.totalorder %v117, 0
    %v120 = vxor.u32 %v114, 2147483648
    %v121 = vsel %vm119, %v113, %v120
    %vm122 = vcmp.eq.s32.totalorder %v117, 2
    %v123 = vxor.u32 %v113, 2147483648
    %v124 = vsel %vm122, %v123, %v114
    %v125 = vsel %vm118, %v121, %v124
    %v126 = vsel %vm115, nan, %v125
    %v127 = vand.u32 2147483647, %v21
    %vm128 = vcmp.le.f32.partialorder %v127, 0.7853982
    %vm129 = vcmp.lt.s32.totalorder %v21, 0
    %v130 = vand.u32 %v21, 2139095040
    %v131 = vshrl.u32 %v130, 23
    %v132 = vsub.s32 %v131, 127
    %v133 = vand.u32 2147483647, %v21
    %v134 = vand.u32 %v133, 8388607
    %v135 = vor.u32 %v134, 8388608
    %v136 = vsub.s32 0, %v135
    %v137 = vadd.s32 %v132, 1
    %vm138 = vcmp.gt.s32.totalorder %v137, 0
    %v139 = vsel %vm138, %v137, 0
    %v140 = vshrl.u32 %v139, 5
    %v141 = vand.u32 %v139, 31
    %v142 = vsub.s32 32, %v141
    %v143 = vshrl.u32 683565275, %v142
    %v144 = vshll.u32 683565275, %v141
    %v145 = vshrl.u32 2475754826, %v142
    %v146 = vor.u32 %v144, %v145
    %v147 = vshll.u32 2475754826, %v141
    %v148 = vshrl.u32 2131351028, %v142
    %v149 = vor.u32 %v147, %v148
    %v150 = vshll.u32 2131351028, %v141
    %v151 = vshrl.u32 2102212464, %v142
    %v152 = vor.u32 %v150, %v151
    %v153 = vshll.u32 2102212464, %v141
    %v154 = vshrl.u32 920167782, %v142
    %v155 = vor.u32 %v153, %v154
    %v156 = vshll.u32 920167782, %v141
    %v157 = vshrl.u32 1326507024, %v142
    %v158 = vor.u32 %v156, %v157
    %vm159 = vcmp.lt.s32.totalorder %v140, 1
    %vm160 = vcmp.lt.s32.totalorder %v140, 2
    %vm161 = vcmp.lt.s32.totalorder %v140, 3
    %vm162 = vcmp.lt.s32.totalorder %v140, 4
    %v163 = vsel %vm159, %v143, %v146
    %v164 = vsel %vm162, %v152, 2102212464
    %v165 = vsel %vm161, %v149, %v164
    %v166 = vsel %vm160, %v163, %v165
    %v167 = vsel %vm159, %v146, %v149
    %v168 = vsel %vm162, %v155, 920167782
    %v169 = vsel %vm161, %v152, %v168
    %v170 = vsel %vm160, %v167, %v169
    %v171 = vsel %vm159, %v149, %v152
    %v172 = vsel %vm162, %v158, 1326507024
    %v173 = vsel %vm161, %v155, %v172
    %v174 = vsel %vm160, %v171, %v173
    %v175 = vshll.u32 %v135, 8
    %v176 = vmul.u32.u64.compose %v175, %v174
    %v177 = vextract.low.u32 %v176
    %v178 = vextract.high.u32 %v176
    %v179 = vmul.u32.u64.compose %v175, %v170
    %v180 = vextract.low.u32 %v179
    %v181 = vextract.high.u32 %v179
    %v182 = vmul.u32 %v175, %v166
    %v183 = vadd.s32 %v178, %v180
    %vm184 = vc.u32 %v178, %v180
    %v185 = vadd.s32 %v181, 1
    %v186 = vsel %vm184, %v185, %v181
    %v187 = vadd.s32 %v182, %v186
    %v188 = vadd.s32 %v187, 536870912
    %v189 = vshrl.u32 %v188, 30
    %v190 = vshll.u32 %v189, 30
    %v191 = vsub.s32 %v187, %v190
    %vm192 = vcmp.lt.s32.totalorder %v191, 0
    %v193 = vsub.s32 0, %v191
    %v194 = vsel %vm192, %v193, %v191
    %v195 = vclz %v194
    %v196 = vsub.s32 %v195, 2
    %vm197 = vcmp.gt.s32.totalorder 0, %v196
    %v198 = vsel %vm197, 0, %v196
    %v199 = vsub.s32 32, %v198
    %v200 = vshll.u32 %v191, %v198
    %v201 = vshrl.u32 %v183, %v199
    %v202 = vor.u32 %v200, %v201
    %v203 = vsub.s32 4294967266, %v198
    %v204 = vadd.s32 %v203, 127
    %v205 = vshll.u32 %v204, 23
    %v206 = vor.u32 4788187, %v205
    %v207 = vand.u32 2147483647, %v206
    %v209 = vcvt.s32.f32 %v202
    %v210 = vmul.f32 %v209, %v207
    %v211 = vxor.u32 %v210, 2147483648
    %v212 = vsel %vm129, %v211, %v210
    %v213 = vsub.s32 4, %v189
    %v214 = vsel %vm129, %v213, %v189
    %v215 = vsel %vm128, %v21, %v212
    %v216 = vsel %vm128, 0, %v214
    %v217 = vcosq.f32.pop %v215
    %v218 = vsinq.f32.pop %v215
    %vm219 = vweird.f32 %v21
    %v220 = vand.u32 %v216, 3
    %vm221 = vcmp.lt.s32.totalorder %v220, 2
    %vm222 = vcmp.eq.s32.totalorder %v220, 0
    %v223 = vxor.u32 %v218, 2147483648
    %v224 = vsel %vm222, %v217, %v223
    %vm225 = vcmp.eq.s32.totalorder %v220, 2
    %v226 = vxor.u32 %v217, 2147483648
    %v227 = vsel %vm225, %v226, %v218
    %v228 = vsel %vm221, %v224, %v227
    %v229 = vsel %vm219, nan, %v228
    %s230 = scalar_lea.vmem [#allocation5], 8
    %231 = vst [vmem:[%s230] sm:$0xff] %v126
    %s232 = scalar_lea.vmem [#allocation5], 16
    %233 = vst [vmem:[%s232] sm:$0xff] %v229
    %v234 = vmul.f32 %v126, 2.0
    %v235 = vmul.f32 %v234, %v229
    %v236 = vmul.f32 %v229, %v229
    %v237 = vmul.f32 %v126, %v126
    %v238 = vsub.f32 %v236, %v237
    %s239 = scalar_lea.vmem [#allocation5], 24
    %240 = vst [vmem:[%s239] sm:$0xff] %v235
    %s241 = scalar_lea.vmem [#allocation5], 32
    %242 = vst [vmem:[%s241] sm:$0xff] %v238
    %v243 = vmul.f32 %v235, 2.0
    %v244 = vmul.f32 %v243, %v238
    %v245 = vmul.f32 %v238, %v238
    %v246 = vmul.f32 %v235, %v235
    %v247 = vsub.f32 %v245, %v246
    %s248 = scalar_lea.vmem [#allocation5], 40
    %249 = vst [vmem:[%s248] sm:$0xff] %v244
    %s250 = scalar_lea.vmem [#allocation5], 48
    %251 = vst [vmem:[%s250] sm:$0xff] %v247
    %v252 = vmul.f32 %v244, 2.0
    %v253 = vmul.f32 %v252, %v247
    %v254 = vmul.f32 %v247, %v247
    %v255 = vmul.f32 %v244, %v244
    %v256 = vsub.f32 %v254, %v255
    %s257 = scalar_lea.vmem [#allocation5], 56
    %258 = vst [vmem:[%s257] sm:$0xff] %v253
    %s259 = scalar_lea.vmem [#allocation5], 64
    %260 = vst [vmem:[%s259] sm:$0xff] %v256
    // Predicated region
    $region10: #{tpu_custom_call.1} parent=1 // pred_check
      _
    $region11: #{tpu_custom_call.1} parent=1 // pred_check_branch
      %262 = sbr.rel (0) target = $region13
    $region12: #{tpu_custom_call.1} parent=1 // pred_region
      %s264 = ssub.s32 1152, 1152
      %265 = vsyncadd [#allocation4], %s264
      %s266 = sshll.u32 [#allocation5], 4
      %s267 = int_to_ptr.vmem [resolvable:$true] %s266
      %272 = dma.vmem_to_hbm [thread:$0]  %s267, 1152, %s1, [#allocation4], 128, 128, 8
    $region13: #{tpu_custom_call.1} parent=1 // pred_fallthru
      _
    // Predicated region
    $region14: #{tpu_custom_call.1} parent=1 // pred_check
      _
    $region15: #{tpu_custom_call.1} parent=1 // pred_check_branch
      %274 = sbr.rel (0) target = $region17
    $region16: #{tpu_custom_call.1} parent=1 // pred_region
      %275 = dma.done [#allocation4], 1152
    $region17: #{tpu_custom_call.1} parent=1 // pred_fallthru
      _
    %276 = vsyncpa [#allocation3], 1
    %277 = vsyncpa [#allocation4], 1

</llo_original>
